<compile_context>
chip_gen: v6e
topology: v6e:2x2x1
jax: 0.10.0
libtpu: 0.0.40
codegen_flags: <defaults>
</compile_context>

<pallas_src>
import functools

import jax
import jax.numpy as jnp
from jax.experimental import pallas as pl
from jax.experimental.pallas import tpu as pltpu

LANE = 128        # lane width (last dim)
SUBLANE = 16      # sublane packing for bf16 (second-to-last dim)
BATCH_TILE = 256  # rows per grid step once batch is large (fills a 256-wide MXU)


def _round_up(n, m):
    return ((n + m - 1) // m) * m


# --------------------------------------------------------------------------- #
# Kernel
# --------------------------------------------------------------------------- #
def _fused_mlp_kernel(*refs, num_layers, num_classes):
    # refs = (x, w0, b0, w1, b1, ..., w_{L-1}, b_{L-1}, out)
    x_ref = refs[0]
    o_ref = refs[-1]

    h = x_ref[...]                                   # bf16 (TB, D0_pad)
    for i in range(num_layers):
        w_ref = refs[1 + 2 * i]
        b_ref = refs[2 + 2 * i]
        # MXU matmul: bf16 inputs, f32 accumulation; bias added in f32.
        y = jnp.dot(h, w_ref[...], preferred_element_type=jnp.float32)
        y = y + b_ref[...]                           # (1, Dout_pad) broadcast
        if i < num_layers - 1:
            # bf16 ReLU: halves live-activation vregs; exact vs f32-then-cast.
            h = jnp.maximum(y.astype(jnp.bfloat16), jnp.bfloat16(0))
        else:
            # Mask padded class columns to -inf so an unsliced softmax is safe.
            col = jax.lax.broadcasted_iota(jnp.int32, y.shape, 1)
            h = jnp.where(col < num_classes, y, -jnp.inf)
    o_ref[...] = h.astype(o_ref.dtype)


# --------------------------------------------------------------------------- #
# One-time parameter preparation (hoisted out of the forward path)
# --------------------------------------------------------------------------- #
def prepare_params(params):
    """Pad/cast params once: W -> bf16 (Kpad, Npad), b -> f32 (1, Npad)."""
    padded = []
    cur_pad = _round_up(params[0][0].shape[0], LANE)
    for w, b in params:
        d_in, d_out = w.shape
        dout_pad = _round_up(d_out, LANE)
        w_p = jnp.zeros((cur_pad, dout_pad), jnp.bfloat16)
        w_p = w_p.at[:d_in, :d_out].set(w.astype(jnp.bfloat16))
        b_p = jnp.zeros((1, dout_pad), jnp.float32)
        b_p = b_p.at[0, :d_out].set(b.astype(jnp.float32))
        padded.append((w_p, b_p))
        cur_pad = dout_pad
    return padded


# --------------------------------------------------------------------------- #
# Forward
# --------------------------------------------------------------------------- #
def _classifier_forward_impl(x, padded_params, *, num_classes):
    num_layers = len(padded_params)
    B, din = x.shape
    din_pad = padded_params[0][0].shape[0]
    out_pad = padded_params[-1][0].shape[1]
    assert din <= din_pad and num_classes <= out_pad

    b_pad = _round_up(B, SUBLANE)
    use_grid = b_pad > BATCH_TILE
    if use_grid:
        b_pad = _round_up(b_pad, BATCH_TILE)
        tb = BATCH_TILE
    else:
        tb = b_pad

    # Per-call input padding (params are pre-padded at init; this whole fn is jitted).
    x_p = jnp.zeros((b_pad, din_pad), jnp.bfloat16)
    x_p = x_p.at[:B, :din].set(x.astype(jnp.bfloat16))

    flat_params = [a for wb in padded_params for a in wb]

    # --- VMEM budget: padded params + activations + double-buffered I/O tiles.
    param_bytes = sum(int(a.size) * a.dtype.itemsize for a in flat_params)
    max_feat = max(din_pad, out_pad, *[w.shape[1] for (w, _) in padded_params])
    act_bytes = tb * max_feat * (4 + 2)                       # f32 y + bf16 h
    io_bytes = 2 * (tb * din_pad * 2 + tb * out_pad * 4)      # 2x-buffered x / out tiles
    vmem_need = param_bytes + act_bytes + io_bytes
    # All-weights-resident must fit comfortably even on v7x (64 MiB physical VMEM).
    assert vmem_need < 48 * 1024 * 1024, (
        f"padded params + activations need ~{vmem_need} B of VMEM; "
        "switch to a K/N-tiled per-layer grid for models this large")
    vmem_limit = int(min(max(2 * vmem_need, 32 * 1024 * 1024), 64 * 1024 * 1024))

    kernel = functools.partial(
        _fused_mlp_kernel, num_layers=num_layers, num_classes=num_classes)
    out_shape = jax.ShapeDtypeStruct((b_pad, out_pad), jnp.float32)

    if not use_grid:
        # Small batch: no grid, whole arrays VMEM resident (no pipeline overhead).
        vmem_full = pl.BlockSpec(memory_space=pltpu.MemorySpace.VMEM)
        out_p = pl.pallas_call(
            kernel,
            out_shape=out_shape,
            in_specs=[vmem_full] * (1 + len(flat_params)),
            out_specs=vmem_full,
            compiler_params=pltpu.CompilerParams(vmem_limit_bytes=vmem_limit),
        )(x_p, *flat_params)
    else:
        # Large batch: 1-D parallel grid over batch tiles (MXU-filling 256 rows,
        # megacore-shardable on v7x); weights use a constant index_map so they
        # are DMA'd once and stay resident across grid steps.
        in_specs = [pl.BlockSpec((tb, din_pad), lambda i: (i, 0))]
        for (w_p, b_p) in padded_params:
            in_specs.append(pl.BlockSpec(w_p.shape, lambda i: (0, 0)))
            in_specs.append(pl.BlockSpec(b_p.shape, lambda i: (0, 0)))
        out_p = pl.pallas_call(
            kernel,
            out_shape=out_shape,
            grid=(b_pad // tb,),
            in_specs=in_specs,
            out_specs=pl.BlockSpec((tb, out_pad), lambda i: (i, 0)),
            compiler_params=pltpu.CompilerParams(
                vmem_limit_bytes=vmem_limit,
                dimension_semantics=("parallel",)),
        )(x_p, *flat_params)

    return out_p[:B, :num_classes]


classifier_forward = jax.jit(_classifier_forward_impl, static_argnames=("num_classes",))


# --------------------------------------------------------------------------- #
# Parameter init (mirrors the torch module's layer shapes) and references
# --------------------------------------------------------------------------- #
def init_params(key, num_classes, num_input_features, num_layers):
    params = []
    last_dim = num_input_features
    dims = []
    for _ in range(num_layers - 1):
        dims.append((last_dim, last_dim * 2))
        last_dim *= 2
    dims.append((last_dim, num_classes))

    keys = jax.random.split(key, 2 * len(dims))
    for i, (din, dout) in enumerate(dims):
        bound = 1.0 / jnp.sqrt(din)  # torch nn.Linear default uniform bound
        w = jax.random.uniform(keys[2 * i], (din, dout), jnp.float32, -bound, bound)
        b = jax.random.uniform(keys[2 * i + 1], (dout,), jnp.float32, -bound, bound)
        params.append((w, b))
    return params


def reference_forward_bf16(x, params):
    """Pure-JAX reference with the same bf16-input / f32-accumulate numerics."""
    n = len(params)
    h = x.astype(jnp.bfloat16)
    for i, (w, b) in enumerate(params):
        y = jnp.dot(h, w.astype(jnp.bfloat16), preferred_element_type=jnp.float32) + b
        if i < n - 1:
            h = jnp.maximum(y, 0.0).astype(jnp.bfloat16)
        else:
            h = y
    return h


def reference_forward_f32(x, params):
    """Pure f32 reference (semantics of the torch module)."""
    n = len(params)
    h = x
    for i, (w, b) in enumerate(params):
        h = h @ w + b
        if i < n - 1:
            h = jnp.maximum(h, 0.0)
    return h


if __name__ == "__main__":
    key = jax.random.PRNGKey(0)
    k_param, k_x, k_x2 = jax.random.split(key, 3)

    num_input_features = 32
    num_layers = 3
    num_classes = 10

    params = init_params(k_param, num_classes, num_input_features, num_layers)
    padded_params = prepare_params(params)   # one-time pad + bf16 cast

    # --- small batch: grid-less whole-VMEM path -----------------------------
    batch = 8
    x = jax.random.normal(k_x, (batch, num_input_features), jnp.float32)
    out = classifier_forward(x, padded_params, num_classes=num_classes)
    out = jax.block_until_ready(out)
    assert out.shape == (batch, num_classes)
    assert bool(jnp.all(jnp.isfinite(out)))
    assert jnp.allclose(out, reference_forward_bf16(x, params), atol=1e-4, rtol=1e-4)
    assert jnp.allclose(out, reference_forward_f32(x, params), atol=1e-1, rtol=1e-1)

    # --- larger batch: batch-tiled "parallel" grid path (MXU-filling tiles) --
    batch2 = 512
    x2 = jax.random.normal(k_x2, (batch2, num_input_features), jnp.float32)
    out2 = classifier_forward(x2, padded_params, num_classes=num_classes)
    out2 = jax.block_until_ready(out2)
    assert out2.shape == (batch2, num_classes)
    assert bool(jnp.all(jnp.isfinite(out2)))
    assert jnp.allclose(out2, reference_forward_bf16(x2, params), atol=1e-4, rtol=1e-4)

    print("KERNEL_OK")
</pallas_src>

<mosaic_0001>
module attributes {stable_mosaic.version = 11 : i64} {
  func.func @_fused_mlp_kernel(%arg0: memref<16x128xbf16, #tpu.memory_space<vmem>>, %arg1: memref<128x128xbf16, #tpu.memory_space<vmem>>, %arg2: memref<1x128xf32, #tpu.memory_space<vmem>>, %arg3: memref<128x128xbf16, #tpu.memory_space<vmem>>, %arg4: memref<1x128xf32, #tpu.memory_space<vmem>>, %arg5: memref<128x128xbf16, #tpu.memory_space<vmem>>, %arg6: memref<1x128xf32, #tpu.memory_space<vmem>>, %arg7: memref<16x128xf32, #tpu.memory_space<vmem>>) attributes {dimension_semantics = [], scalar_prefetch = 0 : i64, scratch_operands = 0 : i64, tpu.core_type = #tpu.core_type<tc>} {
    %c0 = arith.constant 0 : index
    %c0_0 = arith.constant 0 : index
    %0 = vector.load %arg0[%c0, %c0_0] : memref<16x128xbf16, #tpu.memory_space<vmem>>, vector<16x128xbf16>
    %c0_1 = arith.constant 0 : index
    %c0_2 = arith.constant 0 : index
    %1 = vector.load %arg1[%c0_1, %c0_2] : memref<128x128xbf16, #tpu.memory_space<vmem>>, vector<128x128xbf16>
    %cst = arith.constant dense<0.000000e+00> : vector<16x128xf32>
    %2 = tpu.matmul %0, %1, %cst {dimension_numbers = #tpu.dot_dimension_numbers<[1], [0], [0], [1], [0, 0, 1, 1], [], []>} : vector<16x128xbf16>, vector<128x128xbf16>, vector<16x128xf32> -> vector<16x128xf32>
    %c0_3 = arith.constant 0 : index
    %c0_4 = arith.constant 0 : index
    %3 = vector.load %arg2[%c0_3, %c0_4] : memref<1x128xf32, #tpu.memory_space<vmem>>, vector<1x128xf32>
    %4 = vector.broadcast %3 : vector<1x128xf32> to vector<16x128xf32>
    %5 = arith.addf %2, %4 : vector<16x128xf32>
    %6 = arith.truncf %5 : vector<16x128xf32> to vector<16x128xbf16>
    %cst_5 = arith.constant 0.000000e+00 : bf16
    %7 = vector.broadcast %cst_5 : bf16 to vector<16x128xbf16>
    %8 = arith.maximumf %6, %7 : vector<16x128xbf16>
    %c0_6 = arith.constant 0 : index
    %c0_7 = arith.constant 0 : index
    %9 = vector.load %arg3[%c0_6, %c0_7] : memref<128x128xbf16, #tpu.memory_space<vmem>>, vector<128x128xbf16>
    %cst_8 = arith.constant dense<0.000000e+00> : vector<16x128xf32>
    %10 = tpu.matmul %8, %9, %cst_8 {dimension_numbers = #tpu.dot_dimension_numbers<[1], [0], [0], [1], [0, 0, 1, 1], [], []>} : vector<16x128xbf16>, vector<128x128xbf16>, vector<16x128xf32> -> vector<16x128xf32>
    %c0_9 = arith.constant 0 : index
    %c0_10 = arith.constant 0 : index
    %11 = vector.load %arg4[%c0_9, %c0_10] : memref<1x128xf32, #tpu.memory_space<vmem>>, vector<1x128xf32>
    %12 = vector.broadcast %11 : vector<1x128xf32> to vector<16x128xf32>
    %13 = arith.addf %10, %12 : vector<16x128xf32>
    %14 = arith.truncf %13 : vector<16x128xf32> to vector<16x128xbf16>
    %cst_11 = arith.constant 0.000000e+00 : bf16
    %15 = vector.broadcast %cst_11 : bf16 to vector<16x128xbf16>
    %16 = arith.maximumf %14, %15 : vector<16x128xbf16>
    %c0_12 = arith.constant 0 : index
    %c0_13 = arith.constant 0 : index
    %17 = vector.load %arg5[%c0_12, %c0_13] : memref<128x128xbf16, #tpu.memory_space<vmem>>, vector<128x128xbf16>
    %cst_14 = arith.constant dense<0.000000e+00> : vector<16x128xf32>
    %18 = tpu.matmul %16, %17, %cst_14 {dimension_numbers = #tpu.dot_dimension_numbers<[1], [0], [0], [1], [0, 0, 1, 1], [], []>} : vector<16x128xbf16>, vector<128x128xbf16>, vector<16x128xf32> -> vector<16x128xf32>
    %c0_15 = arith.constant 0 : index
    %c0_16 = arith.constant 0 : index
    %19 = vector.load %arg6[%c0_15, %c0_16] : memref<1x128xf32, #tpu.memory_space<vmem>>, vector<1x128xf32>
    %20 = vector.broadcast %19 : vector<1x128xf32> to vector<16x128xf32>
    %21 = arith.addf %18, %20 : vector<16x128xf32>
    %22 = tpu.iota {dimensions = array<i32: 1>} : vector<16x128xi32>
    %c10_i32 = arith.constant 10 : i32
    %23 = vector.broadcast %c10_i32 : i32 to vector<16x128xi32>
    %24 = arith.cmpi slt, %22, %23 : vector<16x128xi32>
    %cst_17 = arith.constant 0xFF800000 : f32
    %25 = vector.broadcast %cst_17 : f32 to vector<16x128xf32>
    %26 = arith.select %24, %21, %25 : vector<16x128xi1>, vector<16x128xf32>
    %c0_18 = arith.constant 0 : index
    %c0_19 = arith.constant 0 : index
    %27 = vector.load %arg7[%c0_18, %c0_19] : memref<16x128xf32, #tpu.memory_space<vmem>>, vector<16x128xf32>
    tpu.vector_store %arg7[%c0_18, %c0_19], %26 {strides = array<i32>} : memref<16x128xf32, #tpu.memory_space<vmem>>, vector<16x128xf32>,
    return
  }
}

</mosaic_0001>

<llo_original>
// kernel: _classifier_forward_impl.1
$region0: #{_classifier_forward_impl.1}
  #allocation0 [shape = 'u32[]', space=smem, size = 0x4, offset = 0x4, fixed_abs, tag = 'smem constant byte address 0x4 - core index']
  #allocation1 [shape = 'u32[144,128]{1,0:T(1,128)}', space=vmem, size = 0x12000, scoped, tag = 'internal scratch']
  %s0 = inlined_call_operand.vmem [shape: bf16[16,128], index: 0, kind: input, shape index: {}]
  %s1 = inlined_call_operand.hbm [shape: bf16[128,128], index: 1, kind: input, shape index: {}]
  %s2 = inlined_call_operand.vmem [shape: f32[1,128], index: 2, kind: input, shape index: {}]
  %s3 = inlined_call_operand.hbm [shape: bf16[128,128], index: 3, kind: input, shape index: {}]
  %s4 = inlined_call_operand.vmem [shape: f32[1,128], index: 4, kind: input, shape index: {}]
  %s5 = inlined_call_operand.hbm [shape: bf16[128,128], index: 5, kind: input, shape index: {}]
  %s6 = inlined_call_operand.vmem [shape: f32[1,128], index: 6, kind: input, shape index: {}]
  %s7 = inlined_call_operand.vmem [shape: f32[16,128], index: 7, kind: output, shape index: {}]
  %s8 = sld [smem:[#allocation0]]
  $region50: #{_classifier_forward_impl.1} parent=0
    _
  %s10 = ssub.s32 1, %s8
  %s11 = scalar_select 0, %s10, %s8
  $region1: #{_classifier_forward_impl.1} parent=0
    #allocation2 [shape = 'u8[32768]{0}', space=vmem, size = 0x8000, scoped, tag = 'input window, operand 1, single buffered']
    #allocation3 [shape = 's32[1]{0}', space=sflag, size = 0x4, scoped, tag = 'scoped memory for _classifier_forward_impl.1']
    #allocation4 [shape = 'u8[32768]{0}', space=vmem, size = 0x8000, scoped, tag = 'input window, operand 3, single buffered']
    #allocation5 [shape = 's32[1]{0}', space=sflag, size = 0x4, scoped, tag = 'scoped memory for _classifier_forward_impl.1']
    #allocation6 [shape = 'u8[32768]{0}', space=vmem, size = 0x8000, scoped, tag = 'input window, operand 5, single buffered']
    %12 = vsyncpa [#allocation3], 0
    %13 = vsyncpa [#allocation5], 0
    // Predicated region
    $region2: #{_classifier_forward_impl.1} parent=1 // pred_check
      _
    $region3: #{_classifier_forward_impl.1} parent=1 // pred_check_branch
      %15 = sbr.rel (0) target = $region5
    $region4: #{_classifier_forward_impl.1} parent=1 // pred_region
      _
    $region5: #{_classifier_forward_impl.1} parent=1 // pred_fallthru
      _
    // Predicated region
    $region6: #{_classifier_forward_impl.1} parent=1 // pred_check
      _
    $region7: #{_classifier_forward_impl.1} parent=1 // pred_check_branch
      %17 = sbr.rel (0) target = $region9
    $region8: #{_classifier_forward_impl.1} parent=1 // pred_region
      %s19 = ssub.s32 1024, 1024
      %20 = vsyncadd [#allocation3], %s19
      %s21 = sshll.u32 [#allocation2], 4
      %s22 = int_to_ptr.vmem [resolvable:$true] %s21
      %27 = dma.hbm_to_vmem [thread:$0]  %s1, 1024, %s22, [#allocation3], 64, 64, 4
    $region9: #{_classifier_forward_impl.1} parent=1 // pred_fallthru
      _
    // Predicated region
    $region10: #{_classifier_forward_impl.1} parent=1 // pred_check
      _
    $region11: #{_classifier_forward_impl.1} parent=1 // pred_check_branch
      %29 = sbr.rel (0) target = $region13
    $region12: #{_classifier_forward_impl.1} parent=1 // pred_region
      _
    $region13: #{_classifier_forward_impl.1} parent=1 // pred_fallthru
      _
    // Predicated region
    $region14: #{_classifier_forward_impl.1} parent=1 // pred_check
      _
    $region15: #{_classifier_forward_impl.1} parent=1 // pred_check_branch
      %31 = sbr.rel (0) target = $region17
    $region16: #{_classifier_forward_impl.1} parent=1 // pred_region
      %s33 = ssub.s32 1024, 1024
      %34 = vsyncadd [#allocation5], %s33
      %s35 = sshll.u32 [#allocation4], 4
      %s36 = int_to_ptr.vmem [resolvable:$true] %s35
      %41 = dma.hbm_to_vmem [thread:$0]  %s3, 1024, %s36, [#allocation5], 64, 64, 4
    $region17: #{_classifier_forward_impl.1} parent=1 // pred_fallthru
      _
    // Predicated region
    $region18: #{_classifier_forward_impl.1} parent=1 // pred_check
      _
    $region19: #{_classifier_forward_impl.1} parent=1 // pred_check_branch
      %43 = sbr.rel (0) target = $region21
    $region20: #{_classifier_forward_impl.1} parent=1 // pred_region
      _
    $region21: #{_classifier_forward_impl.1} parent=1 // pred_fallthru
      _
    // Predicated region
    $region22: #{_classifier_forward_impl.1} parent=1 // pred_check
      _
    $region23: #{_classifier_forward_impl.1} parent=1 // pred_check_branch
      %45 = sbr.rel (0) target = $region25
    $region24: #{_classifier_forward_impl.1} parent=1 // pred_region
      %s47 = ssub.s32 1024, 1024
      %48 = vsyncadd [#allocation5], %s47
      %s49 = sshll.u32 [#allocation6], 4
      %s50 = int_to_ptr.vmem [resolvable:$true] %s49
      %55 = dma.hbm_to_vmem [thread:$0]  %s5, 1024, %s50, [#allocation5], 64, 64, 4
    $region25: #{_classifier_forward_impl.1} parent=1 // pred_fallthru
      _
    // Predicated region
    $region26: #{_classifier_forward_impl.1} parent=1 // pred_check
      _
    $region27: #{_classifier_forward_impl.1} parent=1 // pred_check_branch
      %57 = sbr.rel (0) target = $region29
    $region28: #{_classifier_forward_impl.1} parent=1 // pred_region
      _
    $region29: #{_classifier_forward_impl.1} parent=1 // pred_fallthru
      _
    // Predicated region
    $region30: #{_classifier_forward_impl.1} parent=1 // pred_check
      _
    $region31: #{_classifier_forward_impl.1} parent=1 // pred_check_branch
      %59 = sbr.rel (0) target = $region33
    $region32: #{_classifier_forward_impl.1} parent=1 // pred_region
      %60 = dma.done [#allocation3], 1024
    $region33: #{_classifier_forward_impl.1} parent=1 // pred_fallthru
      _
    // Predicated region
    $region34: #{_classifier_forward_impl.1} parent=1 // pred_check
      _
    $region35: #{_classifier_forward_impl.1} parent=1 // pred_check_branch
      %62 = sbr.rel (0) target = $region37
    $region36: #{_classifier_forward_impl.1} parent=1 // pred_region
      %63 = dma.done [#allocation5], 1024
    $region37: #{_classifier_forward_impl.1} parent=1 // pred_fallthru
      _
    // Predicated region
    $region38: #{_classifier_forward_impl.1} parent=1 // pred_check
      _
    $region39: #{_classifier_forward_impl.1} parent=1 // pred_check_branch
      %65 = sbr.rel (0) target = $region41
    $region40: #{_classifier_forward_impl.1} parent=1 // pred_region
      %66 = dma.done [#allocation5], 1024
    $region41: #{_classifier_forward_impl.1} parent=1 // pred_fallthru
      _
    %v68 = vld [vmem:[%s0] sm:$0xf]
    %v69 = vld [vmem:[%s0 + $0x4] sm:$0xf]
    %v70 = vld [vmem:[#allocation2] sm:$0xf]
    %v71 = vld [vmem:[#allocation2 + $0x4] sm:$0xf]
    %v72 = vld [vmem:[#allocation2 + $0x8] sm:$0xf]
    %v73 = vld [vmem:[#allocation2 + $0xc] sm:$0xf]
    %v74 = vld [vmem:[#allocation2 + $0x10] sm:$0xf]
    %v75 = vld [vmem:[#allocation2 + $0x14] sm:$0xf]
    %v76 = vld [vmem:[#allocation2 + $0x18] sm:$0xf]
    %v77 = vld [vmem:[#allocation2 + $0x1c] sm:$0xf]
    %v78 = vld [vmem:[#allocation2 + $0x20] sm:$0xf]
    %v79 = vld [vmem:[#allocation2 + $0x24] sm:$0xf]
    %v80 = vld [vmem:[#allocation2 + $0x28] sm:$0xf]
    %v81 = vld [vmem:[#allocation2 + $0x2c] sm:$0xf]
    %v82 = vld [vmem:[#allocation2 + $0x30] sm:$0xf]
    %v83 = vld [vmem:[#allocation2 + $0x34] sm:$0xf]
    %v84 = vld [vmem:[#allocation2 + $0x38] sm:$0xf]
    %v85 = vld [vmem:[#allocation2 + $0x3c] sm:$0xf]
    %v86 = vld [vmem:[%s2] sm:$0x1]
    %v88 = vlaneseq
    %v89 = vshrl.u32 %v88, 7
    %v90 = vsub.s32 0, %v89
    %v91 = vrot.slane %v86, %v90
    %v95 = vunpack.c.l.b16 %v68
    %v96 = vunpack.c.l.b16 %v69
    %v97 = vpack.c.b16 %v96, %v95
    %v115 = vunpack.c.l.b16 %v70
    %v116 = vunpack.c.l.b16 %v71
    %v117 = vunpack.c.l.b16 %v72
    %v118 = vunpack.c.l.b16 %v73
    %v119 = vunpack.c.l.b16 %v74
    %v120 = vunpack.c.l.b16 %v75
    %v121 = vunpack.c.l.b16 %v76
    %v122 = vunpack.c.l.b16 %v77
    %v123 = vunpack.c.l.b16 %v78
    %v124 = vunpack.c.l.b16 %v79
    %v125 = vunpack.c.l.b16 %v80
    %v126 = vunpack.c.l.b16 %v81
    %v127 = vunpack.c.l.b16 %v82
    %v128 = vunpack.c.l.b16 %v83
    %v129 = vunpack.c.l.b16 %v84
    %v130 = vunpack.c.l.b16 %v85
    %v131 = vpack.c.b16 %v116, %v115
    %v132 = vpack.c.b16 %v118, %v117
    %v133 = vpack.c.b16 %v120, %v119
    %v134 = vpack.c.b16 %v122, %v121
    %v135 = vpack.c.b16 %v124, %v123
    %v136 = vpack.c.b16 %v126, %v125
    %v137 = vpack.c.b16 %v128, %v127
    %v138 = vpack.c.b16 %v130, %v129
    %147 = vmatprep.subr.bf16.mxu0 0
    %148 = vmatpush1.bf16.msra.mxu0 %v138
    %149 = vmatprep.subr.bf16.mxu0 0
    %150 = vmatpush1.bf16.msra.mxu0 %v137
    %151 = vmatprep.subr.bf16.mxu0 0
    %152 = vmatpush1.bf16.msra.mxu0 %v136
    %153 = vmatprep.subr.bf16.mxu0 0
    %154 = vmatpush1.bf16.msra.mxu0 %v135
    %155 = vmatprep.subr.bf16.mxu0 0
    %156 = vmatpush1.bf16.msra.mxu0 %v134
    %157 = vmatprep.subr.bf16.mxu0 0
    %158 = vmatpush1.bf16.msra.mxu0 %v133
    %159 = vmatprep.subr.bf16.mxu0 0
    %160 = vmatpush1.bf16.msra.mxu0 %v132
    %161 = vmatprep.subr.bf16.mxu0 0
    %162 = vmatpush1.bf16.msra.mxu0 %v131
    %163 = vmatprep.subr.bf16.mxu0 0
    %164 = vmatpush2.bf16.msra.mxu0 0
    %165 = vmatprep.subr.bf16.mxu0 0
    %166 = vmatpush2.bf16.msra.mxu0 0
    %167 = vmatprep.subr.bf16.mxu0 0
    %168 = vmatpush2.bf16.msra.mxu0 0
    %169 = vmatprep.subr.bf16.mxu0 0
    %170 = vmatpush2.bf16.msra.mxu0 0
    %171 = vmatprep.subr.bf16.mxu0 0
    %172 = vmatpush2.bf16.msra.mxu0 0
    %173 = vmatprep.subr.bf16.mxu0 0
    %174 = vmatpush2.bf16.msra.mxu0 0
    %175 = vmatprep.subr.bf16.mxu0 0
    %176 = vmatpush2.bf16.msra.mxu0 0
    %177 = vmatprep.subr.bf16.mxu0 0
    %178 = vmatpush2.bf16.msra.mxu0 0
    %179 = vmatprep.mubr.bf16.mxu0 0
    %180 = vmatmul.mubr.bf16.gmra.mxu0 %v97
    %v181 = vpop.f32.mrf.mxu0
    %v182 = vadd.f32 %v91, %v181
    %v183 = vpop.f32.mrf.mxu0
    %v184 = vpop.f32.mrf.mxu0
    %v185 = vadd.f32 %v91, %v184
    %v186 = vpop.f32.mrf.mxu0
    %187 = vdwg.mxu0
    %v188 = vpack.c.bf16 %v185, %v182
    %v189 = vmax.bf16 %v188, 0
    %v190 = vld [vmem:[#allocation4] sm:$0xf]
    %v191 = vld [vmem:[#allocation4 + $0x4] sm:$0xf]
    %v192 = vld [vmem:[#allocation4 + $0x8] sm:$0xf]
    %v193 = vld [vmem:[#allocation4 + $0xc] sm:$0xf]
    %v194 = vld [vmem:[#allocation4 + $0x10] sm:$0xf]
    %v195 = vld [vmem:[#allocation4 + $0x14] sm:$0xf]
    %v196 = vld [vmem:[#allocation4 + $0x18] sm:$0xf]
    %v197 = vld [vmem:[#allocation4 + $0x1c] sm:$0xf]
    %v198 = vld [vmem:[#allocation4 + $0x20] sm:$0xf]
    %v199 = vld [vmem:[#allocation4 + $0x24] sm:$0xf]
    %v200 = vld [vmem:[#allocation4 + $0x28] sm:$0xf]
    %v201 = vld [vmem:[#allocation4 + $0x2c] sm:$0xf]
    %v202 = vld [vmem:[#allocation4 + $0x30] sm:$0xf]
    %v203 = vld [vmem:[#allocation4 + $0x34] sm:$0xf]
    %v204 = vld [vmem:[#allocation4 + $0x38] sm:$0xf]
    %v205 = vld [vmem:[#allocation4 + $0x3c] sm:$0xf]
    %v206 = vld [vmem:[%s4] sm:$0x1]
    %v208 = vlaneseq
    %v209 = vshrl.u32 %v208, 7
    %v210 = vsub.s32 0, %v209
    %v211 = vrot.slane %v206, %v210
    %v229 = vunpack.c.l.b16 %v190
    %v230 = vunpack.c.l.b16 %v191
    %v231 = vunpack.c.l.b16 %v192
    %v232 = vunpack.c.l.b16 %v193
    %v233 = vunpack.c.l.b16 %v194
    %v234 = vunpack.c.l.b16 %v195
    %v235 = vunpack.c.l.b16 %v196
    %v236 = vunpack.c.l.b16 %v197
    %v237 = vunpack.c.l.b16 %v198
    %v238 = vunpack.c.l.b16 %v199
    %v239 = vunpack.c.l.b16 %v200
    %v240 = vunpack.c.l.b16 %v201
    %v241 = vunpack.c.l.b16 %v202
    %v242 = vunpack.c.l.b16 %v203
    %v243 = vunpack.c.l.b16 %v204
    %v244 = vunpack.c.l.b16 %v205
    %v245 = vpack.c.b16 %v230, %v229
    %v246 = vpack.c.b16 %v232, %v231
    %v247 = vpack.c.b16 %v234, %v233
    %v248 = vpack.c.b16 %v236, %v235
    %v249 = vpack.c.b16 %v238, %v237
    %v250 = vpack.c.b16 %v240, %v239
    %v251 = vpack.c.b16 %v242, %v241
    %v252 = vpack.c.b16 %v244, %v243
    %261 = vmatprep.subr.bf16.mxu0 0
    %262 = vmatpush1.bf16.msra.mxu0 %v252
    %263 = vmatprep.subr.bf16.mxu0 0
    %264 = vmatpush1.bf16.msra.mxu0 %v251
    %265 = vmatprep.subr.bf16.mxu0 0
    %266 = vmatpush1.bf16.msra.mxu0 %v250
    %267 = vmatprep.subr.bf16.mxu0 0
    %268 = vmatpush1.bf16.msra.mxu0 %v249
    %269 = vmatprep.subr.bf16.mxu0 0
    %270 = vmatpush1.bf16.msra.mxu0 %v248
    %271 = vmatprep.subr.bf16.mxu0 0
    %272 = vmatpush1.bf16.msra.mxu0 %v247
    %273 = vmatprep.subr.bf16.mxu0 0
    %274 = vmatpush1.bf16.msra.mxu0 %v246
    %275 = vmatprep.subr.bf16.mxu0 0
    %276 = vmatpush1.bf16.msra.mxu0 %v245
    %277 = vmatprep.subr.bf16.mxu0 0
    %278 = vmatpush2.bf16.msra.mxu0 0
    %279 = vmatprep.subr.bf16.mxu0 0
    %280 = vmatpush2.bf16.msra.mxu0 0
    %281 = vmatprep.subr.bf16.mxu0 0
    %282 = vmatpush2.bf16.msra.mxu0 0
    %283 = vmatprep.subr.bf16.mxu0 0
    %284 = vmatpush2.bf16.msra.mxu0 0
    %285 = vmatprep.subr.bf16.mxu0 0
    %286 = vmatpush2.bf16.msra.mxu0 0
    %287 = vmatprep.subr.bf16.mxu0 0
    %288 = vmatpush2.bf16.msra.mxu0 0
    %289 = vmatprep.subr.bf16.mxu0 0
    %290 = vmatpush2.bf16.msra.mxu0 0
    %291 = vmatprep.subr.bf16.mxu0 0
    %292 = vmatpush2.bf16.msra.mxu0 0
    %293 = vmatprep.mubr.bf16.mxu0 0
    %294 = vmatmul.mubr.bf16.gmra.mxu0 %v189
    %v295 = vpop.f32.mrf.mxu0
    %v296 = vadd.f32 %v211, %v295
    %v297 = vpop.f32.mrf.mxu0
    %v298 = vpop.f32.mrf.mxu0
    %v299 = vadd.f32 %v211, %v298
    %v300 = vpop.f32.mrf.mxu0
    %301 = vdwg.mxu0
    %v302 = vpack.c.bf16 %v299, %v296
    %v303 = vmax.bf16 %v302, 0
    %v304 = vld [vmem:[#allocation6] sm:$0xf]
    %v305 = vld [vmem:[#allocation6 + $0x4] sm:$0xf]
    %v306 = vld [vmem:[#allocation6 + $0x8] sm:$0xf]
    %v307 = vld [vmem:[#allocation6 + $0xc] sm:$0xf]
    %v308 = vld [vmem:[#allocation6 + $0x10] sm:$0xf]
    %v309 = vld [vmem:[#allocation6 + $0x14] sm:$0xf]
    %v310 = vld [vmem:[#allocation6 + $0x18] sm:$0xf]
    %v311 = vld [vmem:[#allocation6 + $0x1c] sm:$0xf]
    %v312 = vld [vmem:[#allocation6 + $0x20] sm:$0xf]
    %v313 = vld [vmem:[#allocation6 + $0x24] sm:$0xf]
    %v314 = vld [vmem:[#allocation6 + $0x28] sm:$0xf]
    %v315 = vld [vmem:[#allocation6 + $0x2c] sm:$0xf]
    %v316 = vld [vmem:[#allocation6 + $0x30] sm:$0xf]
    %v317 = vld [vmem:[#allocation6 + $0x34] sm:$0xf]
    %v318 = vld [vmem:[#allocation6 + $0x38] sm:$0xf]
    %v319 = vld [vmem:[#allocation6 + $0x3c] sm:$0xf]
    %v320 = vld [vmem:[%s6] sm:$0x1]
    %v322 = vlaneseq
    %v323 = vshrl.u32 %v322, 7
    %v324 = vsub.s32 0, %v323
    %v325 = vrot.slane %v320, %v324
    %v343 = vunpack.c.l.b16 %v304
    %v344 = vunpack.c.l.b16 %v305
    %v345 = vunpack.c.l.b16 %v306
    %v346 = vunpack.c.l.b16 %v307
    %v347 = vunpack.c.l.b16 %v308
    %v348 = vunpack.c.l.b16 %v309
    %v349 = vunpack.c.l.b16 %v310
    %v350 = vunpack.c.l.b16 %v311
    %v351 = vunpack.c.l.b16 %v312
    %v352 = vunpack.c.l.b16 %v313
    %v353 = vunpack.c.l.b16 %v314
    %v354 = vunpack.c.l.b16 %v315
    %v355 = vunpack.c.l.b16 %v316
    %v356 = vunpack.c.l.b16 %v317
    %v357 = vunpack.c.l.b16 %v318
    %v358 = vunpack.c.l.b16 %v319
    %v359 = vpack.c.b16 %v344, %v343
    %v360 = vpack.c.b16 %v346, %v345
    %v361 = vpack.c.b16 %v348, %v347
    %v362 = vpack.c.b16 %v350, %v349
    %v363 = vpack.c.b16 %v352, %v351
    %v364 = vpack.c.b16 %v354, %v353
    %v365 = vpack.c.b16 %v356, %v355
    %v366 = vpack.c.b16 %v358, %v357
    %375 = vmatprep.subr.bf16.mxu0 0
    %376 = vmatpush1.bf16.msra.mxu0 %v366
    %377 = vmatprep.subr.bf16.mxu0 0
    %378 = vmatpush1.bf16.msra.mxu0 %v365
    %379 = vmatprep.subr.bf16.mxu0 0
    %380 = vmatpush1.bf16.msra.mxu0 %v364
    %381 = vmatprep.subr.bf16.mxu0 0
    %382 = vmatpush1.bf16.msra.mxu0 %v363
    %383 = vmatprep.subr.bf16.mxu0 0
    %384 = vmatpush1.bf16.msra.mxu0 %v362
    %385 = vmatprep.subr.bf16.mxu0 0
    %386 = vmatpush1.bf16.msra.mxu0 %v361
    %387 = vmatprep.subr.bf16.mxu0 0
    %388 = vmatpush1.bf16.msra.mxu0 %v360
    %389 = vmatprep.subr.bf16.mxu0 0
    %390 = vmatpush1.bf16.msra.mxu0 %v359
    %391 = vmatprep.subr.bf16.mxu0 0
    %392 = vmatpush2.bf16.msra.mxu0 0
    %393 = vmatprep.subr.bf16.mxu0 0
    %394 = vmatpush2.bf16.msra.mxu0 0
    %395 = vmatprep.subr.bf16.mxu0 0
    %396 = vmatpush2.bf16.msra.mxu0 0
    %397 = vmatprep.subr.bf16.mxu0 0
    %398 = vmatpush2.bf16.msra.mxu0 0
    %399 = vmatprep.subr.bf16.mxu0 0
    %400 = vmatpush2.bf16.msra.mxu0 0
    %401 = vmatprep.subr.bf16.mxu0 0
    %402 = vmatpush2.bf16.msra.mxu0 0
    %403 = vmatprep.subr.bf16.mxu0 0
    %404 = vmatpush2.bf16.msra.mxu0 0
    %405 = vmatprep.subr.bf16.mxu0 0
    %406 = vmatpush2.bf16.msra.mxu0 0
    %407 = vmatprep.mubr.bf16.mxu0 0
    %408 = vmatmul.mubr.bf16.gmra.mxu0 %v303
    %v409 = vpop.f32.mrf.mxu0
    %v410 = vadd.f32 %v325, %v409
    %v411 = vpop.f32.mrf.mxu0
    %v412 = vpop.f32.mrf.mxu0
    %v413 = vadd.f32 %v325, %v412
    %v414 = vpop.f32.mrf.mxu0
    %415 = vdwg.mxu0
    %v416 = vlaneseq
    %v417 = vand.u32 %v416, 127
    %vm418 = vcmp.lt.s32.totalorder %v417, 10
    %v419 = vsel %vm418, %v410, -inf
    %v420 = vsel %vm418, %v413, -inf
    %421 = vst [vmem:[%s7] sm:$0xff] %v419
    %422 = vst [vmem:[%s7 + $0x8] sm:$0xff] %v420
    // Predicated region
    $region42: #{_classifier_forward_impl.1} parent=1 // pred_check
      _
    $region43: #{_classifier_forward_impl.1} parent=1 // pred_check_branch
      %424 = sbr.rel (0) target = $region45
    $region44: #{_classifier_forward_impl.1} parent=1 // pred_region
      _
    $region45: #{_classifier_forward_impl.1} parent=1 // pred_fallthru
      _
    // Predicated region
    $region46: #{_classifier_forward_impl.1} parent=1 // pred_check
      _
    $region47: #{_classifier_forward_impl.1} parent=1 // pred_check_branch
      %426 = sbr.rel (0) target = $region49
    $region48: #{_classifier_forward_impl.1} parent=1 // pred_region
      _
    $region49: #{_classifier_forward_impl.1} parent=1 // pred_fallthru
      _
    %427 = vsyncpa [#allocation3], 1
    %428 = vsyncpa [#allocation5], 1

</llo_original>
